<compile_context>
chip_gen: v7x
topology: tpu7x:2x2x1
jax: 0.10.0
libtpu: 0.0.40
codegen_flags: <defaults>
</compile_context>

<pallas_src>
import functools

import jax
import jax.numpy as jnp
from jax.experimental import pallas as pl
from jax.experimental.pallas import tpu as pltpu


def _round_up(x, m):
    return (x + m - 1) // m * m


def _cat_embedder_kernel(idx_ref, seed_ref, tab_hbm, out_ref, gbuf, sem, *,
                         emb_dims, training: bool, drop_p: float):
    """One grid step gathers + packs ALL features for one batch tile.

    idx_ref : (F, B)           int32  SMEM (scalar prefetch) category ids
    seed_ref: (1,)             int32  SMEM (scalar prefetch) dropout seed
    tab_hbm : (F, C_pad, E_pad) f32   HBM (memory_space=pl.ANY) stacked tables
    out_ref : (bt, total_emb)  f32    VMEM output block (packed, no padding)
    gbuf    : (F, bt, E_pad)   table-dtype VMEM gather buffer
    sem     : ()               DMA semaphore shared by all row copies
    """
    t = pl.program_id(0)
    bt = out_ref.shape[0]
    base = t * bt
    n_feat = len(emb_dims)

    def _row_copy(f, r):
        c_dim = emb_dims[f][0]
        c = idx_ref[f, base + r]
        # torch.nn.Embedding raises on out-of-range ids; clamp so an invalid id
        # can never become an out-of-bounds DMA.
        c = jnp.minimum(jnp.maximum(c, 0), c_dim - 1)
        return pltpu.make_async_copy(
            tab_hbm.at[f, pl.ds(c, 1), :],   # (1, E_pad) row in HBM
            gbuf.at[f, pl.ds(r, 1), :],      # (1, E_pad) slot in VMEM
            sem)

    # Phase 1: enqueue every row gather (bt rows x F features).  Each copy is a
    # lane-aligned E_pad-wide row; all of them run concurrently on the DMA
    # engine while the rest are still being issued.
    for f in range(n_feat):
        @pl.loop(0, bt)
        def _issue(r, f=f):
            _row_copy(f, r).start()

    # Phase 2: wait for all of them.  A single shared semaphore is safe because
    # total waits == total completions, and gbuf is only read after the loop.
    for f in range(n_feat):
        @pl.loop(0, bt)
        def _wait(r, f=f):
            _row_copy(f, r).wait()

    # Phase 3: assemble the packed (bt, total_emb) tile with static lane
    # slices -- the concatenation of torch.cat([...], dim=1) happens here, so
    # no E_pad padding is ever written to HBM and no JAX-side glue is needed.
    pieces = [gbuf[f, :, :e] for f, (_, e) in enumerate(emb_dims)]
    packed = jnp.concatenate(pieces, axis=-1).astype(jnp.float32)

    if training and drop_p > 0.0:
        # nn.Dropout(p): zero with prob p, scale survivors by 1/(1-p).
        # Applied once to the packed tile only (no padded lanes).
        pltpu.prng_seed(seed_ref[0] + t)
        bits = pltpu.bitcast(pltpu.prng_random_bits(packed.shape), jnp.uint32)
        u = (bits >> jnp.uint32(8)).astype(jnp.float32) * jnp.float32(1.0 / (1 << 24))
        keep = u >= jnp.float32(drop_p)
        packed = jnp.where(keep, packed * jnp.float32(1.0 / (1.0 - drop_p)), 0.0)

    out_ref[...] = packed.astype(out_ref.dtype)


class CatEmbedderPallas:
    """JAX/Pallas equivalent of lightautoml CatEmbedder."""

    def __init__(self, cat_dims, emb_dropout=0.1, emb_ratio=3, max_emb_size=50,
                 key=jax.random.PRNGKey(0), table_dtype=jnp.float32):
        self.emb_dims = [(int(x), int(min(max_emb_size, max(1, (x + 1) // emb_ratio))))
                         for x in cat_dims]
        self.no_of_embs = sum(y for _, y in self.emb_dims)
        assert self.no_of_embs != 0, "The input is empty."
        self.drop_p = float(emb_dropout)

        self.n_feats = len(self.emb_dims)
        self.c_pad = _round_up(max(x for x, _ in self.emb_dims), 8)
        # Rows are gathered one at a time; padding E to a lane multiple keeps
        # every row DMA 128-lane aligned.  The padding never reaches the output.
        self.e_pad = _round_up(max(y for _, y in self.emb_dims), 128)
        # table_dtype=jnp.bfloat16 halves the gathered bytes / HBM footprint if
        # reduced precision is acceptable; default f32 matches torch exactly.
        self.table_dtype = table_dtype

        # nn.Embedding default init: N(0, 1). Zero-pad into a stacked tensor
        # that lives in HBM only (never pulled into VMEM as a whole).
        tables = jnp.zeros((self.n_feats, self.c_pad, self.e_pad), table_dtype)
        keys = jax.random.split(key, self.n_feats)
        self._raw_tables = []
        for i, (c, e) in enumerate(self.emb_dims):
            w = jax.random.normal(keys[i], (c, e), jnp.float32)
            self._raw_tables.append(w)
            tables = tables.at[i, :c, :e].set(w.astype(table_dtype))
        self.tables = tables

    def get_out_shape(self) -> int:
        return self.no_of_embs

    def __call__(self, cat_idx, *, training=False, seed=0):
        """cat_idx: (B, F) integer array of category ids."""
        b, f = cat_idx.shape
        assert f == self.n_feats
        idx_fb = jnp.asarray(cat_idx, jnp.int32).T          # (F, B) -> SMEM
        seed_arr = jnp.array([seed], jnp.int32)

        # Batch tile: sublane-aligned when possible, few grid steps.
        if b % 8 == 0:
            bt = min(b, 256)
            while b % bt:
                bt -= 8
        else:
            bt = b                                           # full-array block
        grid = (b // bt,)

        kernel = functools.partial(
            _cat_embedder_kernel,
            emb_dims=tuple(self.emb_dims),
            training=training, drop_p=self.drop_p)

        out = pl.pallas_call(
            kernel,
            out_shape=jax.ShapeDtypeStruct((b, self.no_of_embs), jnp.float32),
            grid_spec=pltpu.PrefetchScalarGridSpec(
                num_scalar_prefetch=2,                       # idx, seed -> SMEM
                grid=grid,
                in_specs=[
                    pl.BlockSpec(memory_space=pl.ANY),       # tables stay in HBM
                ],
                out_specs=pl.BlockSpec((bt, self.no_of_embs),
                                       lambda t, idx, seed: (t, 0)),
                scratch_shapes=[
                    pltpu.VMEM((self.n_feats, bt, self.e_pad), self.table_dtype),
                    pltpu.SemaphoreType.DMA(()),
                ]),
            compiler_params=pltpu.CompilerParams(
                dimension_semantics=("parallel",)),          # v7x: 2 TCs share tiles
        )(idx_fb, seed_arr, self.tables)
        return out

    def reference(self, cat_idx):
        """Pure-JAX reference (eval mode: dropout is identity)."""
        idx = jnp.asarray(cat_idx, jnp.int32)
        return jnp.concatenate(
            [self._raw_tables[i][idx[:, i]] for i in range(self.n_feats)], axis=1)


if __name__ == "__main__":
    key = jax.random.PRNGKey(0)
    k_param, k_idx = jax.random.split(key)

    # Small, forward-consistent shapes: batch=8, 3 categorical features.
    cat_dims = [7, 12, 30]          # emb dims -> 2, 4, 10  (total 16)
    batch = 8

    model = CatEmbedderPallas(cat_dims, emb_dropout=0.1, key=k_param)

    # Uniform per-feature category ids (randint broadcasts the per-column max).
    cat = jax.random.randint(k_idx, (batch, len(cat_dims)), 0,
                             jnp.array(cat_dims, jnp.int32)).astype(jnp.int32)

    # Eval mode (deterministic): dropout is identity, like nn.Dropout.eval().
    out = model(cat, training=False)
    out = jax.block_until_ready(out)

    assert out.shape == (batch, model.get_out_shape()), out.shape
    ref = model.reference(cat)
    assert jnp.allclose(out, ref, atol=1e-6, rtol=1e-6), "mismatch vs reference"

    print("KERNEL_OK")
</pallas_src>

<mosaic_0001>
module attributes {stable_mosaic.version = 11 : i64} {
  func.func @_cat_embedder_kernel(%arg0: i32, %arg1: memref<3x8xi32, #tpu.memory_space<smem>>, %arg2: memref<1xi32, #tpu.memory_space<smem>>, %arg3: memref<3x32x128xf32, #tpu.memory_space<any>>, %arg4: memref<8x16xf32, #tpu.memory_space<vmem>>, %arg5: memref<3x8x128xf32, #tpu.memory_space<vmem>>, %arg6: memref<!tpu.dma_semaphore, #tpu.memory_space<semaphore_mem>>) attributes {dimension_semantics = [#tpu.dimension_semantics<parallel>], iteration_bounds = array<i64: 1>, scalar_prefetch = 2 : i64, scratch_operands = 2 : i64, tpu.core_type = #tpu.core_type<tc>, window_params = [{}, {transform_indices = @transform_1, window_bounds = array<i64: 8, 16>}]} {
    %c8_i32 = arith.constant 8 : i32
    %0 = arith.muli %arg0, %c8_i32 : i32
    %c0_i32 = arith.constant 0 : i32
    %c8_i32_0 = arith.constant 8 : i32
    %1 = arith.addi %c0_i32, %c8_i32_0 : i32
    %c1_i32 = arith.constant 1 : i32
    scf.for %arg7 = %c0_i32 to %1 step %c1_i32  : i32 {
      %c1_i32_30 = arith.constant 1 : i32
      %15 = arith.muli %arg7, %c1_i32_30 : i32
      %c0_i32_31 = arith.constant 0 : i32
      %16 = arith.addi %c0_i32_31, %15 : i32
      %17 = arith.addi %0, %16 : i32
      %c0_32 = arith.constant 0 : index
      %18 = arith.index_cast %17 : i32 to index
      %19 = memref.load %arg1[%c0_32, %18] : memref<3x8xi32, #tpu.memory_space<smem>>
      %c0_i32_33 = arith.constant 0 : i32
      %20 = arith.maxsi %19, %c0_i32_33 : i32
      %c6_i32 = arith.constant 6 : i32
      %21 = arith.minsi %20, %c6_i32 : i32
      %c0_i32_34 = arith.constant 0 : i32
      %c0_i32_35 = arith.constant 0 : i32
      %c0_i32_36 = arith.constant 0 : i32
      %22 = tpu.memref_slice %arg3[%c0_i32_34, %21, %c0_i32_36] : memref<3x32x128xf32, #tpu.memory_space<any>> -> memref<1x1x128xf32, #tpu.memory_space<any>>
      %23 = tpu.memref_squeeze %22 : memref<1x1x128xf32, #tpu.memory_space<any>> -> memref<1x128xf32, #tpu.memory_space<any>>
      %c0_i32_37 = arith.constant 0 : i32
      %24 = tpu.memref_slice %arg5[%c0_i32_35, %16, %c0_i32_37] : memref<3x8x128xf32, #tpu.memory_space<vmem>> -> memref<1x1x128xf32, #tpu.memory_space<vmem>>
      %25 = tpu.memref_squeeze %24 : memref<1x1x128xf32, #tpu.memory_space<vmem>> -> memref<1x128xf32, #tpu.memory_space<vmem>>
      tpu.enqueue_dma source(%23 : memref<1x128xf32, #tpu.memory_space<any>>) target(%25 : memref<1x128xf32, #tpu.memory_space<vmem>>) target_semaphore(%arg6 : memref<!tpu.dma_semaphore, #tpu.memory_space<semaphore_mem>>)
    }
    %c8_i32_1 = arith.constant 8 : i32
    %c0_i32_2 = arith.constant 0 : i32
    %c8_i32_3 = arith.constant 8 : i32
    %2 = arith.addi %c0_i32_2, %c8_i32_3 : i32
    %c1_i32_4 = arith.constant 1 : i32
    scf.for %arg7 = %c0_i32_2 to %2 step %c1_i32_4  : i32 {
      %c1_i32_30 = arith.constant 1 : i32
      %15 = arith.muli %arg7, %c1_i32_30 : i32
      %c0_i32_31 = arith.constant 0 : i32
      %16 = arith.addi %c0_i32_31, %15 : i32
      %17 = arith.addi %0, %16 : i32
      %c1_32 = arith.constant 1 : index
      %18 = arith.index_cast %17 : i32 to index
      %19 = memref.load %arg1[%c1_32, %18] : memref<3x8xi32, #tpu.memory_space<smem>>
      %c0_i32_33 = arith.constant 0 : i32
      %20 = arith.maxsi %19, %c0_i32_33 : i32
      %c11_i32 = arith.constant 11 : i32
      %21 = arith.minsi %20, %c11_i32 : i32
      %c1_i32_34 = arith.constant 1 : i32
      %c1_i32_35 = arith.constant 1 : i32
      %c0_i32_36 = arith.constant 0 : i32
      %22 = tpu.memref_slice %arg3[%c1_i32_34, %21, %c0_i32_36] : memref<3x32x128xf32, #tpu.memory_space<any>> -> memref<1x1x128xf32, #tpu.memory_space<any>>
      %23 = tpu.memref_squeeze %22 : memref<1x1x128xf32, #tpu.memory_space<any>> -> memref<1x128xf32, #tpu.memory_space<any>>
      %c0_i32_37 = arith.constant 0 : i32
      %24 = tpu.memref_slice %arg5[%c1_i32_35, %16, %c0_i32_37] : memref<3x8x128xf32, #tpu.memory_space<vmem>> -> memref<1x1x128xf32, #tpu.memory_space<vmem>>
      %25 = tpu.memref_squeeze %24 : memref<1x1x128xf32, #tpu.memory_space<vmem>> -> memref<1x128xf32, #tpu.memory_space<vmem>>
      tpu.enqueue_dma source(%23 : memref<1x128xf32, #tpu.memory_space<any>>) target(%25 : memref<1x128xf32, #tpu.memory_space<vmem>>) target_semaphore(%arg6 : memref<!tpu.dma_semaphore, #tpu.memory_space<semaphore_mem>>)
    }
    %c8_i32_5 = arith.constant 8 : i32
    %c0_i32_6 = arith.constant 0 : i32
    %c8_i32_7 = arith.constant 8 : i32
    %3 = arith.addi %c0_i32_6, %c8_i32_7 : i32
    %c1_i32_8 = arith.constant 1 : i32
    scf.for %arg7 = %c0_i32_6 to %3 step %c1_i32_8  : i32 {
      %c1_i32_30 = arith.constant 1 : i32
      %15 = arith.muli %arg7, %c1_i32_30 : i32
      %c0_i32_31 = arith.constant 0 : i32
      %16 = arith.addi %c0_i32_31, %15 : i32
      %17 = arith.addi %0, %16 : i32
      %c2_32 = arith.constant 2 : index
      %18 = arith.index_cast %17 : i32 to index
      %19 = memref.load %arg1[%c2_32, %18] : memref<3x8xi32, #tpu.memory_space<smem>>
      %c0_i32_33 = arith.constant 0 : i32
      %20 = arith.maxsi %19, %c0_i32_33 : i32
      %c29_i32 = arith.constant 29 : i32
      %21 = arith.minsi %20, %c29_i32 : i32
      %c2_i32 = arith.constant 2 : i32
      %c2_i32_34 = arith.constant 2 : i32
      %c0_i32_35 = arith.constant 0 : i32
      %22 = tpu.memref_slice %arg3[%c2_i32, %21, %c0_i32_35] : memref<3x32x128xf32, #tpu.memory_space<any>> -> memref<1x1x128xf32, #tpu.memory_space<any>>
      %23 = tpu.memref_squeeze %22 : memref<1x1x128xf32, #tpu.memory_space<any>> -> memref<1x128xf32, #tpu.memory_space<any>>
      %c0_i32_36 = arith.constant 0 : i32
      %24 = tpu.memref_slice %arg5[%c2_i32_34, %16, %c0_i32_36] : memref<3x8x128xf32, #tpu.memory_space<vmem>> -> memref<1x1x128xf32, #tpu.memory_space<vmem>>
      %25 = tpu.memref_squeeze %24 : memref<1x1x128xf32, #tpu.memory_space<vmem>> -> memref<1x128xf32, #tpu.memory_space<vmem>>
      tpu.enqueue_dma source(%23 : memref<1x128xf32, #tpu.memory_space<any>>) target(%25 : memref<1x128xf32, #tpu.memory_space<vmem>>) target_semaphore(%arg6 : memref<!tpu.dma_semaphore, #tpu.memory_space<semaphore_mem>>)
    }
    %c8_i32_9 = arith.constant 8 : i32
    %c0_i32_10 = arith.constant 0 : i32
    %c8_i32_11 = arith.constant 8 : i32
    %4 = arith.addi %c0_i32_10, %c8_i32_11 : i32
    %c1_i32_12 = arith.constant 1 : i32
    scf.for %arg7 = %c0_i32_10 to %4 step %c1_i32_12  : i32 {
      %c1_i32_30 = arith.constant 1 : i32
      %15 = arith.muli %arg7, %c1_i32_30 : i32
      %c0_i32_31 = arith.constant 0 : i32
      %16 = arith.addi %c0_i32_31, %15 : i32
      %17 = arith.addi %0, %16 : i32
      %c0_32 = arith.constant 0 : index
      %18 = arith.index_cast %17 : i32 to index
      %19 = memref.load %arg1[%c0_32, %18] : memref<3x8xi32, #tpu.memory_space<smem>>
      %c0_i32_33 = arith.constant 0 : i32
      %20 = arith.maxsi %19, %c0_i32_33 : i32
      %c6_i32 = arith.constant 6 : i32
      %21 = arith.minsi %20, %c6_i32 : i32
      %c0_i32_34 = arith.constant 0 : i32
      %c0_i32_35 = arith.constant 0 : i32
      %c0_i32_36 = arith.constant 0 : i32
      %22 = tpu.memref_slice %arg3[%c0_i32_34, %21, %c0_i32_36] : memref<3x32x128xf32, #tpu.memory_space<any>> -> memref<1x1x128xf32, #tpu.memory_space<any>>
      %23 = tpu.memref_squeeze %22 : memref<1x1x128xf32, #tpu.memory_space<any>> -> memref<1x128xf32, #tpu.memory_space<any>>
      %c0_i32_37 = arith.constant 0 : i32
      %24 = tpu.memref_slice %arg5[%c0_i32_35, %16, %c0_i32_37] : memref<3x8x128xf32, #tpu.memory_space<vmem>> -> memref<1x1x128xf32, #tpu.memory_space<vmem>>
      %25 = tpu.memref_squeeze %24 : memref<1x1x128xf32, #tpu.memory_space<vmem>> -> memref<1x128xf32, #tpu.memory_space<vmem>>
      tpu.wait_dma2 semaphore(%arg6 : memref<!tpu.dma_semaphore, #tpu.memory_space<semaphore_mem>>) src(%23 : memref<1x128xf32, #tpu.memory_space<any>>) dst(%25 : memref<1x128xf32, #tpu.memory_space<vmem>>)
    }
    %c8_i32_13 = arith.constant 8 : i32
    %c0_i32_14 = arith.constant 0 : i32
    %c8_i32_15 = arith.constant 8 : i32
    %5 = arith.addi %c0_i32_14, %c8_i32_15 : i32
    %c1_i32_16 = arith.constant 1 : i32
    scf.for %arg7 = %c0_i32_14 to %5 step %c1_i32_16  : i32 {
      %c1_i32_30 = arith.constant 1 : i32
      %15 = arith.muli %arg7, %c1_i32_30 : i32
      %c0_i32_31 = arith.constant 0 : i32
      %16 = arith.addi %c0_i32_31, %15 : i32
      %17 = arith.addi %0, %16 : i32
      %c1_32 = arith.constant 1 : index
      %18 = arith.index_cast %17 : i32 to index
      %19 = memref.load %arg1[%c1_32, %18] : memref<3x8xi32, #tpu.memory_space<smem>>
      %c0_i32_33 = arith.constant 0 : i32
      %20 = arith.maxsi %19, %c0_i32_33 : i32
      %c11_i32 = arith.constant 11 : i32
      %21 = arith.minsi %20, %c11_i32 : i32
      %c1_i32_34 = arith.constant 1 : i32
      %c1_i32_35 = arith.constant 1 : i32
      %c0_i32_36 = arith.constant 0 : i32
      %22 = tpu.memref_slice %arg3[%c1_i32_34, %21, %c0_i32_36] : memref<3x32x128xf32, #tpu.memory_space<any>> -> memref<1x1x128xf32, #tpu.memory_space<any>>
      %23 = tpu.memref_squeeze %22 : memref<1x1x128xf32, #tpu.memory_space<any>> -> memref<1x128xf32, #tpu.memory_space<any>>
      %c0_i32_37 = arith.constant 0 : i32
      %24 = tpu.memref_slice %arg5[%c1_i32_35, %16, %c0_i32_37] : memref<3x8x128xf32, #tpu.memory_space<vmem>> -> memref<1x1x128xf32, #tpu.memory_space<vmem>>
      %25 = tpu.memref_squeeze %24 : memref<1x1x128xf32, #tpu.memory_space<vmem>> -> memref<1x128xf32, #tpu.memory_space<vmem>>
      tpu.wait_dma2 semaphore(%arg6 : memref<!tpu.dma_semaphore, #tpu.memory_space<semaphore_mem>>) src(%23 : memref<1x128xf32, #tpu.memory_space<any>>) dst(%25 : memref<1x128xf32, #tpu.memory_space<vmem>>)
    }
    %c8_i32_17 = arith.constant 8 : i32
    %c0_i32_18 = arith.constant 0 : i32
    %c8_i32_19 = arith.constant 8 : i32
    %6 = arith.addi %c0_i32_18, %c8_i32_19 : i32
    %c1_i32_20 = arith.constant 1 : i32
    scf.for %arg7 = %c0_i32_18 to %6 step %c1_i32_20  : i32 {
      %c1_i32_30 = arith.constant 1 : i32
      %15 = arith.muli %arg7, %c1_i32_30 : i32
      %c0_i32_31 = arith.constant 0 : i32
      %16 = arith.addi %c0_i32_31, %15 : i32
      %17 = arith.addi %0, %16 : i32
      %c2_32 = arith.constant 2 : index
      %18 = arith.index_cast %17 : i32 to index
      %19 = memref.load %arg1[%c2_32, %18] : memref<3x8xi32, #tpu.memory_space<smem>>
      %c0_i32_33 = arith.constant 0 : i32
      %20 = arith.maxsi %19, %c0_i32_33 : i32
      %c29_i32 = arith.constant 29 : i32
      %21 = arith.minsi %20, %c29_i32 : i32
      %c2_i32 = arith.constant 2 : i32
      %c2_i32_34 = arith.constant 2 : i32
      %c0_i32_35 = arith.constant 0 : i32
      %22 = tpu.memref_slice %arg3[%c2_i32, %21, %c0_i32_35] : memref<3x32x128xf32, #tpu.memory_space<any>> -> memref<1x1x128xf32, #tpu.memory_space<any>>
      %23 = tpu.memref_squeeze %22 : memref<1x1x128xf32, #tpu.memory_space<any>> -> memref<1x128xf32, #tpu.memory_space<any>>
      %c0_i32_36 = arith.constant 0 : i32
      %24 = tpu.memref_slice %arg5[%c2_i32_34, %16, %c0_i32_36] : memref<3x8x128xf32, #tpu.memory_space<vmem>> -> memref<1x1x128xf32, #tpu.memory_space<vmem>>
      %25 = tpu.memref_squeeze %24 : memref<1x1x128xf32, #tpu.memory_space<vmem>> -> memref<1x128xf32, #tpu.memory_space<vmem>>
      tpu.wait_dma2 semaphore(%arg6 : memref<!tpu.dma_semaphore, #tpu.memory_space<semaphore_mem>>) src(%23 : memref<1x128xf32, #tpu.memory_space<any>>) dst(%25 : memref<1x128xf32, #tpu.memory_space<vmem>>)
    }
    %c8_i32_21 = arith.constant 8 : i32
    %c0 = arith.constant 0 : index
    %c0_22 = arith.constant 0 : index
    %c0_23 = arith.constant 0 : index
    %7 = vector.load %arg5[%c0, %c0_22, %c0_23] : memref<3x8x128xf32, #tpu.memory_space<vmem>>, vector<1x8x2xf32>
    %8 = vector.shape_cast %7 : vector<1x8x2xf32> to vector<8x2xf32>
    %c1 = arith.constant 1 : index
    %c0_24 = arith.constant 0 : index
    %c0_25 = arith.constant 0 : index
    %9 = vector.load %arg5[%c1, %c0_24, %c0_25] : memref<3x8x128xf32, #tpu.memory_space<vmem>>, vector<1x8x4xf32>
    %10 = vector.shape_cast %9 : vector<1x8x4xf32> to vector<8x4xf32>
    %c2 = arith.constant 2 : index
    %c0_26 = arith.constant 0 : index
    %c0_27 = arith.constant 0 : index
    %11 = vector.load %arg5[%c2, %c0_26, %c0_27] : memref<3x8x128xf32, #tpu.memory_space<vmem>>, vector<1x8x10xf32>
    %12 = vector.shape_cast %11 : vector<1x8x10xf32> to vector<8x10xf32>
    %13 = tpu.concatenate %8, %10, %12 in 1 : vector<8x2xf32>, vector<8x4xf32>, vector<8x10xf32> -> vector<8x16xf32>
    %c0_28 = arith.constant 0 : index
    %c0_29 = arith.constant 0 : index
    %14 = vector.load %arg4[%c0_28, %c0_29] : memref<8x16xf32, #tpu.memory_space<vmem>>, vector<8x16xf32>
    tpu.vector_store %arg4[%c0_28, %c0_29], %13 {strides = array<i32>} : memref<8x16xf32, #tpu.memory_space<vmem>>, vector<8x16xf32>,
    return
  }
  func.func @transform_1(%arg0: i32, %arg1: memref<3x8xi32, #tpu.memory_space<smem>>, %arg2: memref<1xi32, #tpu.memory_space<smem>>) -> (i32, i32) {
    %c0_i32 = arith.constant 0 : i32
    %c0_i32_0 = arith.constant 0 : i32
    return %arg0, %c0_i32 : i32, i32
  }
}

</mosaic_0001>

<llo_original>
// kernel: tpu_custom_call.1
$region0: #{tpu_custom_call.1}
  #allocation0 [shape = 'u32[]', space=smem, size = 0x4, offset = 0x4, fixed_abs, tag = 'smem constant byte address 0x4 - core index']
  #allocation1 [shape = 'u32[144,128]{1,0:T(1,128)}', space=vmem, size = 0x12000, scoped, tag = 'internal scratch']
  #allocation2 [shape = 'f32[3,8,128]{2,1,0:T(8,128)}', space=vmem, size = 0x3000, scoped, tag = 'scratch operand']
  #allocation3 [shape = 's32[1]{0}', space=sflag, size = 0x4, scoped, tag = 'scratch operand']
  #allocation4 [shape = 's32[1]{0}', space=sflag, size = 0x4, scoped, tag = 'scoped memory for tpu_custom_call.1']
  #allocation5 [shape = 'u8[2048]{0}', space=smem, size = 0x800, scoped, tag = 'prefetched SMEM operand 0']
  #allocation6 [shape = 's32[1]{0:T(128)S(6)}', space=smem, size = 0x200, scoped, tag = 'prefetched SMEM operand 1']
  #allocation9 [shape = 's32[]', space=sflag, size = 0x4, offset = 0, fixed_abs, tag = 'sflag constant byte address 0x0 - dummy sync flag']
  #allocation10 [shape = 's32[]', space=sflag, size = 0x4, offset = 0, fixed_abs, tag = 'sflag constant byte address 0x0 - dummy sync flag']
  #allocation11 [shape = 'u32[]', space=smem, size = 0x4, offset = 0x44, fixed_abs, tag = 'smem constant byte address 0x44 - assertion arg 0']
  #allocation12 [shape = 'u32[]', space=smem, size = 0x4, offset = 0x48, fixed_abs, tag = 'smem constant byte address 0x48 - assertion arg 1']
  #allocation13 [shape = 's32[]', space=sflag, size = 0x4, offset = 0, fixed_abs, tag = 'sflag constant byte address 0x0 - dummy sync flag']
  #allocation14 [shape = 's32[]', space=sflag, size = 0x4, offset = 0, fixed_abs, tag = 'sflag constant byte address 0x0 - dummy sync flag']
  #allocation15 [shape = 's32[]', space=sflag, size = 0x4, offset = 0, fixed_abs, tag = 'sflag constant byte address 0x0 - dummy sync flag']
  #allocation16 [shape = 's32[]', space=sflag, size = 0x4, offset = 0, fixed_abs, tag = 'sflag constant byte address 0x0 - dummy sync flag']
  %s0 = inlined_call_operand.hbm [shape: s32[3,8], index: 0, kind: input, shape index: {}]
  %s1 = inlined_call_operand.<no memory space> [shape: s32[1], index: 1, kind: input, shape index: {}]
  %s2 = inlined_call_operand.hbm [shape: f32[3,32,128], index: 2, kind: input, shape index: {}]
  %s3 = inlined_call_operand.hbm [shape: f32[8,16], index: 3, kind: output, shape index: {}]
  %s4 = sld [smem:[#allocation0]]
  $region64: #{tpu_custom_call.1} parent=0
    _
  %s6 = ssub.s32 1, %s4
  %s7 = scalar_select 0, %s6, %s4
  %9 = dma.hbm_to_smem %s0, 64, [#allocation5], [#allocation4]
  %10 = sst [smem:[#allocation6]] %s1
  %11 = dma.done [#allocation4], 64
  %12 = sfence
  $region1: #{tpu_custom_call.1} parent=0
    #allocation7 [shape = 'u8[4096]{0}', space=vmem, size = 0x1000, scoped, tag = 'output window, operand 0, single buffered']
    #allocation8 [shape = 's32[1]{0}', space=sflag, size = 0x4, scoped, tag = 'scoped memory for tpu_custom_call.1']
    %13 = vsyncpa [#allocation8], 0
    %s14 = smul.u32 0, 8
    loop: start=0, step=1, limit=8
    $region2: #{tpu_custom_call.1} parent=1 // loop_pre_header
      _
    $region3: #{tpu_custom_call.1} parent=1 // loop_header
      %s16 = sphi 0, %s20
      %p17 = scmp.ge.s32.totalorder %s16, 8
    $region4: #{tpu_custom_call.1} parent=1 // loop_header_branch
      %19 = sbr.rel (%p17) target = $region8
    $region5: #{tpu_custom_call.1} parent=1 // loop_body
      %s21 = sadd.s32 %s14, %s16
      %s22 = sld [smem:[#allocation5 + %s21]]
      %p23 = scmp.gt.s32.totalorder %s22, 0
      %s24 = scalar_select %p23, %s22, 0
      %p25 = scmp.lt.s32.totalorder %s24, 6
      %s26 = scalar_select %p25, %s24, 6
      %s27 = smul.addr %s26, 16
      %s28 = scalar_lea.hbm %s2, %s27
      %s29 = scalar_lea.vmem [#allocation2], %s16
      // Predicated region
      $region9: #{tpu_custom_call.1} parent=5 // pred_check
        _
      $region10: #{tpu_custom_call.1} parent=5 // pred_check_branch
        %31 = sbr.rel target = $region12
      $region11: #{tpu_custom_call.1} parent=5 // pred_region
        %32 = sst [smem:[#allocation11]] [#allocation10]
        %33 = sst [smem:[#allocation12]] [#allocation9]
      $region12: #{tpu_custom_call.1} parent=5 // pred_fallthru
        _
      %35 = shalt.err (0)
      %s37 = sshll.u32 %s29, 4
      %s38 = int_to_ptr.vmem [resolvable:$true] %s37
      %40 = dma.hbm_to_vmem [thread:$0]  %s28, 16, %s38, [#allocation3]
    $region6: #{tpu_custom_call.1} parent=1 // loop_footer
      %s20 = sadd.s32 1, %s16
    $region7: #{tpu_custom_call.1} parent=1 // loop_footer_branch
      %15 = sbr.rel target = $region3
    $region8: #{tpu_custom_call.1} parent=1 // loop_exit
      _
    loop: start=0, step=1, limit=8
    $region13: #{tpu_custom_call.1} parent=1 // loop_pre_header
      _
    $region14: #{tpu_custom_call.1} parent=1 // loop_header
      %s42 = sphi 0, %s46
      %p43 = scmp.ge.s32.totalorder %s42, 8
    $region15: #{tpu_custom_call.1} parent=1 // loop_header_branch
      %45 = sbr.rel (%p43) target = $region19
    $region16: #{tpu_custom_call.1} parent=1 // loop_body
      %s47 = sadd.s32 %s14, %s42
      %s48 = sshra.s32 %s47, 7
      %s49 = sand.u32 %s47, 127
      %s50 = sadd.s32 %s48, 1
      %s51 = smul.u32 %s50, 128
      %s52 = sshra.s32 %s47, 7
      %s53 = sand.u32 %s47, 127
      %s54 = sadd.s32 %s51, %s53
      %s55 = sld [smem:[#allocation5 + %s54]]
      %p56 = scmp.gt.s32.totalorder %s55, 0
      %s57 = scalar_select %p56, %s55, 0
      %p58 = scmp.lt.s32.totalorder %s57, 11
      %s59 = scalar_select %p58, %s57, 11
      %s60 = sadd.s32 %s59, 32
      %s61 = smul.addr %s60, 16
      %s62 = scalar_lea.hbm %s2, %s61
      %s63 = sadd.s32 %s42, 8
      %s64 = scalar_lea.vmem [#allocation2], %s63
      // Predicated region
      $region20: #{tpu_custom_call.1} parent=16 // pred_check
        _
      $region21: #{tpu_custom_call.1} parent=16 // pred_check_branch
        %66 = sbr.rel target = $region23
      $region22: #{tpu_custom_call.1} parent=16 // pred_region
        %67 = sst [smem:[#allocation11]] [#allocation14]
        %68 = sst [smem:[#allocation12]] [#allocation13]
      $region23: #{tpu_custom_call.1} parent=16 // pred_fallthru
        _
      %70 = shalt.err (0)
      %s72 = sshll.u32 %s64, 4
      %s73 = int_to_ptr.vmem [resolvable:$true] %s72
      %75 = dma.hbm_to_vmem [thread:$0]  %s62, 16, %s73, [#allocation3]
    $region17: #{tpu_custom_call.1} parent=1 // loop_footer
      %s46 = sadd.s32 1, %s42
    $region18: #{tpu_custom_call.1} parent=1 // loop_footer_branch
      %41 = sbr.rel target = $region14
    $region19: #{tpu_custom_call.1} parent=1 // loop_exit
      _
    loop: start=0, step=1, limit=8
    $region24: #{tpu_custom_call.1} parent=1 // loop_pre_header
      _
    $region25: #{tpu_custom_call.1} parent=1 // loop_header
      %s77 = sphi 0, %s81
      %p78 = scmp.ge.s32.totalorder %s77, 8
    $region26: #{tpu_custom_call.1} parent=1 // loop_header_branch
      %80 = sbr.rel (%p78) target = $region30
    $region27: #{tpu_custom_call.1} parent=1 // loop_body
      %s82 = sadd.s32 %s14, %s77
      %s83 = sshra.s32 %s82, 7
      %s84 = sand.u32 %s82, 127
      %s85 = sadd.s32 %s83, 2
      %s86 = smul.u32 %s85, 128
      %s87 = sshra.s32 %s82, 7
      %s88 = sand.u32 %s82, 127
      %s89 = sadd.s32 %s86, %s88
      %s90 = sld [smem:[#allocation5 + %s89]]
      %p91 = scmp.gt.s32.totalorder %s90, 0
      %s92 = scalar_select %p91, %s90, 0
      %p93 = scmp.lt.s32.totalorder %s92, 29
      %s94 = scalar_select %p93, %s92, 29
      %s95 = sadd.s32 %s94, 64
      %s96 = smul.addr %s95, 16
      %s97 = scalar_lea.hbm %s2, %s96
      %s98 = sadd.s32 %s77, 16
      %s99 = scalar_lea.vmem [#allocation2], %s98
      // Predicated region
      $region31: #{tpu_custom_call.1} parent=27 // pred_check
        _
      $region32: #{tpu_custom_call.1} parent=27 // pred_check_branch
        %101 = sbr.rel target = $region34
      $region33: #{tpu_custom_call.1} parent=27 // pred_region
        %102 = sst [smem:[#allocation11]] [#allocation16]
        %103 = sst [smem:[#allocation12]] [#allocation15]
      $region34: #{tpu_custom_call.1} parent=27 // pred_fallthru
        _
      %105 = shalt.err (0)
      %s107 = sshll.u32 %s99, 4
      %s108 = int_to_ptr.vmem [resolvable:$true] %s107
      %110 = dma.hbm_to_vmem [thread:$0]  %s97, 16, %s108, [#allocation3]
    $region28: #{tpu_custom_call.1} parent=1 // loop_footer
      %s81 = sadd.s32 1, %s77
    $region29: #{tpu_custom_call.1} parent=1 // loop_footer_branch
      %76 = sbr.rel target = $region25
    $region30: #{tpu_custom_call.1} parent=1 // loop_exit
      _
    loop: start=0, step=1, limit=8
    $region35: #{tpu_custom_call.1} parent=1 // loop_pre_header
      _
    $region36: #{tpu_custom_call.1} parent=1 // loop_header
      %s112 = sphi 0, %s116
      %p113 = scmp.ge.s32.totalorder %s112, 8
    $region37: #{tpu_custom_call.1} parent=1 // loop_header_branch
      %115 = sbr.rel (%p113) target = $region41
    $region38: #{tpu_custom_call.1} parent=1 // loop_body
      %s117 = sadd.s32 %s14, %s112
      %s118 = sld [smem:[#allocation5 + %s117]]
      %s119 = smul.u32 1, 1
      %s120 = sshll.u32 %s119, 4
      %121 = dma.done [#allocation3], %s120
    $region39: #{tpu_custom_call.1} parent=1 // loop_footer
      %s116 = sadd.s32 1, %s112
    $region40: #{tpu_custom_call.1} parent=1 // loop_footer_branch
      %111 = sbr.rel target = $region36
    $region41: #{tpu_custom_call.1} parent=1 // loop_exit
      _
    loop: start=0, step=1, limit=8
    $region42: #{tpu_custom_call.1} parent=1 // loop_pre_header
      _
    $region43: #{tpu_custom_call.1} parent=1 // loop_header
      %s123 = sphi 0, %s127
      %p124 = scmp.ge.s32.totalorder %s123, 8
    $region44: #{tpu_custom_call.1} parent=1 // loop_header_branch
      %126 = sbr.rel (%p124) target = $region48
    $region45: #{tpu_custom_call.1} parent=1 // loop_body
      %s128 = sadd.s32 %s14, %s123
      %s129 = sshra.s32 %s128, 7
      %s130 = sand.u32 %s128, 127
      %s131 = sadd.s32 %s129, 1
      %s132 = smul.u32 %s131, 128
      %s133 = sshra.s32 %s128, 7
      %s134 = sand.u32 %s128, 127
      %s135 = sadd.s32 %s132, %s134
      %s136 = sld [smem:[#allocation5 + %s135]]
      %s137 = smul.u32 1, 1
      %s138 = sshll.u32 %s137, 4
      %139 = dma.done [#allocation3], %s138
    $region46: #{tpu_custom_call.1} parent=1 // loop_footer
      %s127 = sadd.s32 1, %s123
    $region47: #{tpu_custom_call.1} parent=1 // loop_footer_branch
      %122 = sbr.rel target = $region43
    $region48: #{tpu_custom_call.1} parent=1 // loop_exit
      _
    loop: start=0, step=1, limit=8
    $region49: #{tpu_custom_call.1} parent=1 // loop_pre_header
      _
    $region50: #{tpu_custom_call.1} parent=1 // loop_header
      %s141 = sphi 0, %s145
      %p142 = scmp.ge.s32.totalorder %s141, 8
    $region51: #{tpu_custom_call.1} parent=1 // loop_header_branch
      %144 = sbr.rel (%p142) target = $region55
    $region52: #{tpu_custom_call.1} parent=1 // loop_body
      %s146 = sadd.s32 %s14, %s141
      %s147 = sshra.s32 %s146, 7
      %s148 = sand.u32 %s146, 127
      %s149 = sadd.s32 %s147, 2
      %s150 = smul.u32 %s149, 128
      %s151 = sshra.s32 %s146, 7
      %s152 = sand.u32 %s146, 127
      %s153 = sadd.s32 %s150, %s152
      %s154 = sld [smem:[#allocation5 + %s153]]
      %s155 = smul.u32 1, 1
      %s156 = sshll.u32 %s155, 4
      %157 = dma.done [#allocation3], %s156
    $region53: #{tpu_custom_call.1} parent=1 // loop_footer
      %s145 = sadd.s32 1, %s141
    $region54: #{tpu_custom_call.1} parent=1 // loop_footer_branch
      %140 = sbr.rel target = $region50
    $region55: #{tpu_custom_call.1} parent=1 // loop_exit
      _
    %v158 = vld [vmem:[#allocation2] sm:$0xff]
    %s159 = scalar_lea.vmem [#allocation2], 8
    %v160 = vld [vmem:[%s159] sm:$0xff]
    %s161 = scalar_lea.vmem [#allocation2], 16
    %v162 = vld [vmem:[%s161] sm:$0xff]
    %164 = vrot.lane.b32.xlu0 %v160, 2
    %v165 = vpop.permute.xlu0 %164
    %168 = vrot.lane.b32.xlu0 %v162, 6
    %v169 = vpop.permute.xlu0 %168
    %vm171 = vcmask 15360
    %v172 = vsel %vm171, %v158, %v165
    %vm173 = vcmask 48128
    %v174 = vsel %vm173, %v172, %v169
    %vm175 = vcmask 130048
    %176 = vst.msk [vmem:[#allocation7] sm:$0xff] %vm175, %v174
    // Predicated region
    $region56: #{tpu_custom_call.1} parent=1 // pred_check
      _
    $region57: #{tpu_custom_call.1} parent=1 // pred_check_branch
      %178 = sbr.rel (0) target = $region59
    $region58: #{tpu_custom_call.1} parent=1 // pred_region
      %s180 = ssub.s32 128, 128
      %181 = vsyncadd [#allocation8], %s180
      %s183 = sshll.u32 [#allocation7], 4
      %s184 = int_to_ptr.vmem [resolvable:$true] %s183
      %186 = dma.vmem_to_hbm [thread:$0]  %s184, 128, %s3, [#allocation8]
    $region59: #{tpu_custom_call.1} parent=1 // pred_fallthru
      _
    // Predicated region
    $region60: #{tpu_custom_call.1} parent=1 // pred_check
      _
    $region61: #{tpu_custom_call.1} parent=1 // pred_check_branch
      %188 = sbr.rel (0) target = $region63
    $region62: #{tpu_custom_call.1} parent=1 // pred_region
      %189 = dma.done [#allocation8], 128
    $region63: #{tpu_custom_call.1} parent=1 // pred_fallthru
      _
    %190 = vsyncpa [#allocation8], 1
  %191 = vsyncmov [#allocation3]
  %s192 = vpop.sfrf %191
  %p193 = scmp.eq.s32.totalorder %s192, 0
  %p194 = pneg %p193
  %196 = shalt.err (%p194)

</llo_original>
